<compile_context>
chip_gen: v5e
topology: v5e:2x2
jax: 0.10.0
libtpu: 0.0.40
codegen_flags: <defaults>
</compile_context>

<pallas_src>
import functools

import numpy as np
import jax
import jax.numpy as jnp
from jax.experimental import pallas as pl
from jax.experimental.pallas import tpu as pltpu


def _round_up(a, b):
    return (a + b - 1) // b * b


def _gcn_agg_kernel(blk_i_ref, blk_k_ref, blk_first_ref,
                    a_ref, h_ref, bias_ref, o_ref, *, tk, h_resident):
    """One step per nonzero adjacency block: out[blk_i] += A_blk @ h[blk_k]."""
    b = pl.program_id(0)

    # First scheduled block of a row tile: initialize the resident output
    # block with the bias.  Every row tile appears at least once in the
    # schedule (dummy all-zero block if it has no edges), so every output
    # block is written.
    @pl.when(blk_first_ref[b] == 1)
    def _():
        o_ref[...] = jnp.broadcast_to(bias_ref[...], o_ref.shape)

    if h_resident:
        # h is resident in VMEM (DMA'd once); slice the k-tile for this block.
        start = pl.multiple_of(blk_k_ref[b] * tk, tk)
        h_tile = h_ref[pl.ds(start, tk), :]
    else:
        h_tile = h_ref[...]

    o_ref[...] += jnp.dot(a_ref[...], h_tile,
                          preferred_element_type=jnp.float32).astype(o_ref.dtype)


def _build_block_schedule(row, col, tm, tk, n_bi, n_bk):
    """Host-side flat block-CSR schedule.

    Returns (blk_i, blk_k, blk_first, edge_blk, nblk):
      blk_i[b], blk_k[b] : (row-tile, k-tile) indices of packed block b,
                           sorted by (blk_i, blk_k) so each row tile's blocks
                           are contiguous.
      blk_first[b]       : 1 iff block b is the first block of its row tile.
      edge_blk[e]        : packed block id edge e scatters into.
      nblk               : number of packed blocks (grid extent).
    Row tiles with no edges get one dummy (all-zero) block so their output
    still receives the bias.
    """
    row = np.asarray(row)
    col = np.asarray(col)
    bi = (col // tm).astype(np.int64)
    bk = (row // tk).astype(np.int64)
    pair = bi * n_bk + bk
    uniq = np.unique(pair)
    blk_i = (uniq // n_bk).astype(np.int32)
    blk_k = (uniq % n_bk).astype(np.int32)

    missing = np.setdiff1d(np.arange(n_bi, dtype=np.int32), blk_i)
    if missing.size:
        blk_i = np.concatenate([blk_i, missing])
        blk_k = np.concatenate([blk_k, np.zeros_like(missing)])
        order = np.lexsort((blk_k, blk_i))   # primary blk_i, secondary blk_k
        blk_i, blk_k = blk_i[order], blk_k[order]

    nblk = int(blk_i.shape[0])
    blk_first = np.ones((nblk,), np.int32)
    if nblk > 1:
        blk_first[1:] = (blk_i[1:] != blk_i[:-1]).astype(np.int32)

    key = blk_i.astype(np.int64) * n_bk + blk_k.astype(np.int64)  # sorted
    edge_blk = np.searchsorted(key, pair).astype(np.int32)

    return (jnp.asarray(blk_i), jnp.asarray(blk_k), jnp.asarray(blk_first),
            jnp.asarray(edge_blk), nblk)


def gcn_forward(x, weight, bias, edge_index, *, tm=512, tk=1024,
                stream_dtype=jnp.float32):
    """x: [N, Cin] f32, weight: [Cout, Cin] f32 (PyTorch layout),
    bias: [Cout] f32, edge_index: [2, E] int32 (concrete array).
    Returns [N, Cout] f32.  stream_dtype=jnp.bfloat16 halves the adjacency/h
    HBM traffic (f32 MXU accumulation kept) at reduced numeric parity."""
    n, _ = x.shape
    cout = weight.shape[0]
    row, col = edge_index[0], edge_index[1]

    # ---- tile sizes ---------------------------------------------------------
    sub = 16 if stream_dtype == jnp.bfloat16 else 8    # bf16 sublane packing
    tm_eff = _round_up(min(tm, _round_up(n, sub)), sub)
    tk_eff = _round_up(min(tk, _round_up(n, 128)), 128)
    n_pad_m = _round_up(n, tm_eff)
    n_pad_k = _round_up(n, tk_eff)
    cout_pad = _round_up(cout, 128)                    # lane-dense output
    n_bi = n_pad_m // tm_eff
    n_bk = n_pad_k // tk_eff

    # ---- plain-JAX glue -----------------------------------------------------
    # h = X @ W^T hoisted out of the kernel: tiny matmul, computed exactly once.
    h = jnp.dot(x, weight.T, preferred_element_type=jnp.float32)
    h_pad = jnp.zeros((n_pad_k, cout_pad), jnp.float32).at[:n, :cout].set(h)
    h_pad = h_pad.astype(stream_dtype)

    # Symmetric GCN normalization.
    deg = jnp.zeros((n,), dtype=jnp.float32).at[col].add(1.0)
    deg_inv_sqrt = jnp.power(deg, -0.5)
    deg_inv_sqrt = jnp.where(jnp.isinf(deg_inv_sqrt), 0.0, deg_inv_sqrt)
    norm = deg_inv_sqrt[row] * deg_inv_sqrt[col]

    # ---- block-CSR packing of the normalized adjacency ----------------------
    blk_i, blk_k, blk_first, edge_blk, nblk = _build_block_schedule(
        row, col, tm_eff, tk_eff, n_bi, n_bk)
    a_blocks = jnp.zeros((nblk, tm_eff, tk_eff), jnp.float32)
    a_blocks = a_blocks.at[edge_blk, col % tm_eff, row % tk_eff].add(norm)
    a_blocks = a_blocks.astype(stream_dtype)

    b_pad = jnp.zeros((1, cout_pad), jnp.float32).at[0, :cout].set(bias)

    # ---- per-generation VMEM budgeting (resident h vs streamed h) -----------
    try:
        vmem_cap = int(pltpu.get_tpu_info().vmem_capacity_bytes)
    except Exception:
        vmem_cap = 64 * 1024 * 1024          # conservative (v7x per-TC)
    item = jnp.dtype(stream_dtype).itemsize
    h_bytes = n_pad_k * cout_pad * item
    a_tile_bytes = tm_eff * tk_eff * item
    out_tile_bytes = tm_eff * cout_pad * 4
    fixed = 2 * a_tile_bytes + 2 * out_tile_bytes + 2 * 8 * cout_pad * 4
    h_resident = (fixed + 2 * h_bytes + (4 << 20)) <= int(vmem_cap * 0.8)
    needed = fixed + (2 * h_bytes if h_resident else 2 * tk_eff * cout_pad * item)
    vmem_limit = int(min(max(needed + (8 << 20), 32 << 20), int(vmem_cap * 0.9)))

    if h_resident:
        h_spec = pl.BlockSpec((n_pad_k, cout_pad),
                              lambda b, bi, bk, bf: (0, 0))   # DMA'd once
    else:
        h_spec = pl.BlockSpec((tk_eff, cout_pad),
                              lambda b, bi, bk, bf: (bk[b], 0))

    kernel = functools.partial(_gcn_agg_kernel, tk=tk_eff, h_resident=h_resident)

    out_pad = pl.pallas_call(
        kernel,
        out_shape=jax.ShapeDtypeStruct((n_pad_m, cout_pad), jnp.float32),
        grid_spec=pltpu.PrefetchScalarGridSpec(
            num_scalar_prefetch=3,
            grid=(nblk,),
            in_specs=[
                # Packed adjacency block b (leading dim squeezed away).
                pl.BlockSpec((None, tm_eff, tk_eff),
                             lambda b, bi, bk, bf: (b, 0, 0)),
                # h: resident full array or streamed k-tile.
                h_spec,
                # bias: single tiny block, DMA'd once.
                pl.BlockSpec((1, cout_pad), lambda b, bi, bk, bf: (0, 0)),
            ],
            out_specs=pl.BlockSpec((tm_eff, cout_pad),
                                   lambda b, bi, bk, bf: (bi[b], 0)),
        ),
        compiler_params=pltpu.CompilerParams(
            # Flat schedule carries the output accumulator across steps.
            dimension_semantics=("arbitrary",),
            vmem_limit_bytes=vmem_limit,
        ),
    )(blk_i, blk_k, blk_first, a_blocks, h_pad, b_pad)

    return out_pad[:n, :cout].astype(x.dtype)


def _reference(x, weight, bias, edge_index):
    """Pure-JAX reference mirroring the PyG message/aggregate semantics."""
    n = x.shape[0]
    row, col = edge_index[0], edge_index[1]
    h = x @ weight.T
    deg = jnp.zeros((n,), dtype=x.dtype).at[col].add(1.0)
    dis = jnp.power(deg, -0.5)
    dis = jnp.where(jnp.isinf(dis), 0.0, dis)
    norm = dis[row] * dis[col]
    msgs = norm[:, None] * h[row]                       # message(x_j, norm)
    out = jnp.zeros((n, h.shape[1]), dtype=x.dtype).at[col].add(msgs)
    return out + bias[None, :]


if __name__ == "__main__":
    key = jax.random.PRNGKey(0)
    k_x, k_w, k_e = jax.random.split(key, 3)

    N, C_IN, C_OUT, E = 16, 4, 8, 40

    x = jax.random.normal(k_x, (N, C_IN), dtype=jnp.float32)
    # Linear.reset_parameters ~ kaiming-uniform; any deterministic init is fine.
    bound = 1.0 / jnp.sqrt(jnp.float32(C_IN))
    weight = jax.random.uniform(k_w, (C_OUT, C_IN),
                                minval=-bound, maxval=bound,
                                dtype=jnp.float32)
    bias = jnp.zeros((C_OUT,), dtype=jnp.float32)       # bias.data.zero_()
    edge_index = jax.random.randint(k_e, (2, E), 0, N, dtype=jnp.int32)

    ref = _reference(x, weight, bias, edge_index)

    # f32 streams (exactly matches the PyTorch module's numerics).
    out = gcn_forward(x, weight, bias, edge_index)
    jax.block_until_ready(out)
    assert out.shape == (N, C_OUT)
    assert jnp.allclose(out, ref, atol=1e-4, rtol=1e-4)

    # bf16-streamed variant (HBM-bandwidth optimization) — looser tolerance.
    out_bf16 = gcn_forward(x, weight, bias, edge_index,
                           stream_dtype=jnp.bfloat16)
    jax.block_until_ready(out_bf16)
    assert jnp.allclose(out_bf16, ref, atol=5e-2, rtol=5e-2)

    print("KERNEL_OK")
</pallas_src>

<mosaic_0001>
module attributes {stable_mosaic.version = 11 : i64} {
  func.func @_gcn_agg_kernel(%arg0: i32, %arg1: memref<1xi32, #tpu.memory_space<smem>>, %arg2: memref<1xi32, #tpu.memory_space<smem>>, %arg3: memref<1xi32, #tpu.memory_space<smem>>, %arg4: memref<1x16x128xf32, #tpu.memory_space<vmem>>, %arg5: memref<128x128xf32, #tpu.memory_space<vmem>>, %arg6: memref<1x128xf32, #tpu.memory_space<vmem>>, %arg7: memref<16x128xf32, #tpu.memory_space<vmem>>) attributes {dimension_semantics = [#tpu.dimension_semantics<arbitrary>], iteration_bounds = array<i64: 1>, scalar_prefetch = 3 : i64, scratch_operands = 0 : i64, tpu.core_type = #tpu.core_type<tc>, window_params = [{transform_indices = @transform_0, window_bounds = array<i64: 1, 16, 128>}, {pipeline_mode = #tpu.pipeline_mode<synchronous>, transform_indices = @transform_1, window_bounds = array<i64: 128, 128>}, {pipeline_mode = #tpu.pipeline_mode<synchronous>, transform_indices = @transform_2, window_bounds = array<i64: 1, 128>}, {transform_indices = @transform_3, window_bounds = array<i64: 16, 128>}]} {
    %0 = arith.index_cast %arg0 : i32 to index
    %1 = memref.load %arg3[%0] : memref<1xi32, #tpu.memory_space<smem>>
    %c1_i32 = arith.constant 1 : i32
    %2 = arith.cmpi eq, %1, %c1_i32 : i32
    %3 = arith.extui %2 : i1 to i32
    %c0_i32 = arith.constant 0 : i32
    %4 = arith.cmpi ne, %3, %c0_i32 : i32
    scf.if %4 {
      %c0_7 = arith.constant 0 : index
      %c0_8 = arith.constant 0 : index
      %17 = vector.load %arg6[%c0_7, %c0_8] : memref<1x128xf32, #tpu.memory_space<vmem>>, vector<1x128xf32>
      %18 = vector.shape_cast %17 : vector<1x128xf32> to vector<1x128xf32>
      %19 = vector.broadcast %18 : vector<1x128xf32> to vector<16x128xf32>
      %c0_9 = arith.constant 0 : index
      %c0_10 = arith.constant 0 : index
      %20 = vector.load %arg7[%c0_9, %c0_10] : memref<16x128xf32, #tpu.memory_space<vmem>>, vector<16x128xf32>
      tpu.vector_store %arg7[%c0_9, %c0_10], %19 {strides = array<i32>} : memref<16x128xf32, #tpu.memory_space<vmem>>, vector<16x128xf32>,
    } else {
    }
    %5 = arith.index_cast %arg0 : i32 to index
    %6 = memref.load %arg2[%5] : memref<1xi32, #tpu.memory_space<smem>>
    %c128_i32 = arith.constant 128 : i32
    %7 = arith.muli %6, %c128_i32 : i32
    %8 = tpu.assume_multiple %7, 128 : i32
    %9 = arith.index_cast %8 : i32 to index
    %c0 = arith.constant 0 : index
    %10 = vector.load %arg5[%9, %c0] : memref<128x128xf32, #tpu.memory_space<vmem>>, vector<128x128xf32>
    %c0_0 = arith.constant 0 : index
    %c0_1 = arith.constant 0 : index
    %11 = vector.load %arg7[%c0_0, %c0_1] : memref<16x128xf32, #tpu.memory_space<vmem>>, vector<16x128xf32>
    %c0_2 = arith.constant 0 : index
    %c0_3 = arith.constant 0 : index
    %c0_4 = arith.constant 0 : index
    %12 = vector.load %arg4[%c0_2, %c0_3, %c0_4] : memref<1x16x128xf32, #tpu.memory_space<vmem>>, vector<1x16x128xf32>
    %13 = vector.shape_cast %12 : vector<1x16x128xf32> to vector<16x128xf32>
    %cst = arith.constant dense<0.000000e+00> : vector<16x128xf32>
    %14 = tpu.matmul %13, %10, %cst {dimension_numbers = #tpu.dot_dimension_numbers<[1], [0], [0], [1], [0, 0, 1, 1], [], []>} : vector<16x128xf32>, vector<128x128xf32>, vector<16x128xf32> -> vector<16x128xf32>
    %15 = arith.addf %11, %14 : vector<16x128xf32>
    %c0_5 = arith.constant 0 : index
    %c0_6 = arith.constant 0 : index
    %16 = vector.load %arg7[%c0_5, %c0_6] : memref<16x128xf32, #tpu.memory_space<vmem>>, vector<16x128xf32>
    tpu.vector_store %arg7[%c0_5, %c0_6], %15 {strides = array<i32>} : memref<16x128xf32, #tpu.memory_space<vmem>>, vector<16x128xf32>,
    return
  }
  func.func @transform_0(%arg0: i32, %arg1: memref<1xi32, #tpu.memory_space<smem>>, %arg2: memref<1xi32, #tpu.memory_space<smem>>, %arg3: memref<1xi32, #tpu.memory_space<smem>>) -> (i32, i32, i32) {
    %c0_i32 = arith.constant 0 : i32
    %c0_i32_0 = arith.constant 0 : i32
    %c0_i32_1 = arith.constant 0 : i32
    return %arg0, %c0_i32, %c0_i32_0 : i32, i32, i32
  }
  func.func @transform_1(%arg0: i32, %arg1: memref<1xi32, #tpu.memory_space<smem>>, %arg2: memref<1xi32, #tpu.memory_space<smem>>, %arg3: memref<1xi32, #tpu.memory_space<smem>>) -> (i32, i32) {
    %c0_i32 = arith.constant 0 : i32
    %c0_i32_0 = arith.constant 0 : i32
    %c0_i32_1 = arith.constant 0 : i32
    return %c0_i32, %c0_i32_0 : i32, i32
  }
  func.func @transform_2(%arg0: i32, %arg1: memref<1xi32, #tpu.memory_space<smem>>, %arg2: memref<1xi32, #tpu.memory_space<smem>>, %arg3: memref<1xi32, #tpu.memory_space<smem>>) -> (i32, i32) {
    %c0_i32 = arith.constant 0 : i32
    %c0_i32_0 = arith.constant 0 : i32
    %c0_i32_1 = arith.constant 0 : i32
    return %c0_i32, %c0_i32_0 : i32, i32
  }
  func.func @transform_3(%arg0: i32, %arg1: memref<1xi32, #tpu.memory_space<smem>>, %arg2: memref<1xi32, #tpu.memory_space<smem>>, %arg3: memref<1xi32, #tpu.memory_space<smem>>) -> (i32, i32) {
    %0 = arith.index_cast %arg0 : i32 to index
    %1 = memref.load %arg1[%0] : memref<1xi32, #tpu.memory_space<smem>>
    %c0_i32 = arith.constant 0 : i32
    %c0_i32_0 = arith.constant 0 : i32
    return %1, %c0_i32 : i32, i32
  }
}

</mosaic_0001>

<llo_original>
// kernel: tpu_custom_call.1
$region0: #{tpu_custom_call.1}
  #allocation0 [shape = 'u32[]', space=smem, size = 0x4, offset = 0x4, fixed_abs, tag = 'smem constant byte address 0x4 - core index']
  #allocation1 [shape = 'u32[72,128]{1,0:T(1,128)}', space=vmem, size = 0x9000, scoped, tag = 'internal scratch']
  #allocation2 [shape = 's32[1]{0}', space=sflag, size = 0x4, scoped, tag = 'scoped memory for tpu_custom_call.1']
  #allocation3 [shape = 's32[1]{0:T(128)S(6)}', space=smem, size = 0x200, scoped, tag = 'prefetched SMEM operand 0']
  #allocation4 [shape = 's32[1]{0:T(128)S(6)}', space=smem, size = 0x200, scoped, tag = 'prefetched SMEM operand 1']
  #allocation5 [shape = 's32[1]{0:T(128)S(6)}', space=smem, size = 0x200, scoped, tag = 'prefetched SMEM operand 2']
  %s0 = inlined_call_operand.<no memory space> [shape: s32[1], index: 0, kind: input, shape index: {}]
  %s1 = inlined_call_operand.<no memory space> [shape: s32[1], index: 1, kind: input, shape index: {}]
  %s2 = inlined_call_operand.<no memory space> [shape: s32[1], index: 2, kind: input, shape index: {}]
  %s3 = inlined_call_operand.hbm [shape: f32[1,16,128], index: 3, kind: input, shape index: {}]
  %s4 = inlined_call_operand.hbm [shape: f32[128,128], index: 4, kind: input, shape index: {}]
  %s5 = inlined_call_operand.vmem [shape: f32[1,128], index: 5, kind: input, shape index: {}]
  %s6 = inlined_call_operand.hbm [shape: f32[16,128], index: 6, kind: output, shape index: {}]
  %s7 = sld [smem:[#allocation0]]
  $region34: #{tpu_custom_call.1} parent=0
    _
  %s9 = ssub.s32 1, %s7
  %s10 = scalar_select 0, %s9, %s7
  %11 = sst [smem:[#allocation3]] %s0
  %12 = sst [smem:[#allocation4]] %s1
  %13 = sst [smem:[#allocation5]] %s2
  $region1: #{tpu_custom_call.1} parent=0
    #allocation6 [shape = 'u8[8192]{0}', space=vmem, size = 0x2000, scoped, tag = 'input window, operand 3, single buffered']
    #allocation7 [shape = 's32[1]{0}', space=sflag, size = 0x4, scoped, tag = 'scoped memory for tpu_custom_call.1']
    #allocation8 [shape = 's32[1]{0}', space=sflag, size = 0x4, scoped, tag = 'scoped memory for tpu_custom_call.1']
    #allocation9 [shape = 'u8[65536]{0}', space=vmem, size = 0x10000, scoped, tag = 'input window, operand 4, single buffered']
    #allocation10 [shape = 's32[1]{0}', space=sflag, size = 0x4, scoped, tag = 'scoped memory for tpu_custom_call.1']
    #allocation11 [shape = 'u8[8192]{0}', space=vmem, size = 0x2000, scoped, tag = 'output window, operand 0, single buffered']
    %14 = vsyncpa [#allocation7], 0
    %15 = vsyncpa [#allocation10], 0
    %16 = vsyncpa [#allocation8], 0
    // Predicated region
    $region2: #{tpu_custom_call.1} parent=1 // pred_check
      _
    $region3: #{tpu_custom_call.1} parent=1 // pred_check_branch
      %18 = sbr.rel (0) target = $region5
    $region4: #{tpu_custom_call.1} parent=1 // pred_region
      %20 = vsyncadd [#allocation7], 0
      %s21 = sshll.u32 %s3, 4
      %s22 = int_to_ptr.hbm [resolvable:$true] %s21
      %s23 = sshll.u32 [#allocation6], 4
      %s24 = int_to_ptr.vmem [resolvable:$true] %s23
      %29 = dma.hbm_to_vmem [thread:$0]  %s22, 256, %s24, [#allocation7], 128, 128, 8
    $region5: #{tpu_custom_call.1} parent=1 // pred_fallthru
      _
    // Predicated region
    $region6: #{tpu_custom_call.1} parent=1 // pred_check
      _
    $region7: #{tpu_custom_call.1} parent=1 // pred_check_branch
      %31 = sbr.rel (0) target = $region9
    $region8: #{tpu_custom_call.1} parent=1 // pred_region
      %33 = vsyncadd [#allocation10], 0
      %s34 = sshll.u32 %s4, 4
      %s35 = int_to_ptr.hbm [resolvable:$true] %s34
      %s36 = sshll.u32 [#allocation9], 4
      %s37 = int_to_ptr.vmem [resolvable:$true] %s36
      %42 = dma.hbm_to_vmem [thread:$0]  %s35, 2048, %s37, [#allocation10], 128, 128, 8
    $region9: #{tpu_custom_call.1} parent=1 // pred_fallthru
      _
    // Predicated region
    $region10: #{tpu_custom_call.1} parent=1 // pred_check
      _
    $region11: #{tpu_custom_call.1} parent=1 // pred_check_branch
      %44 = sbr.rel (0) target = $region13
    $region12: #{tpu_custom_call.1} parent=1 // pred_region
      _
    $region13: #{tpu_custom_call.1} parent=1 // pred_fallthru
      _
    // Predicated region
    $region14: #{tpu_custom_call.1} parent=1 // pred_check
      _
    $region15: #{tpu_custom_call.1} parent=1 // pred_check_branch
      %46 = sbr.rel (0) target = $region17
    $region16: #{tpu_custom_call.1} parent=1 // pred_region
      %48 = dma.done [#allocation7], 256
    $region17: #{tpu_custom_call.1} parent=1 // pred_fallthru
      _
    // Predicated region
    $region18: #{tpu_custom_call.1} parent=1 // pred_check
      _
    $region19: #{tpu_custom_call.1} parent=1 // pred_check_branch
      %50 = sbr.rel (0) target = $region21
    $region20: #{tpu_custom_call.1} parent=1 // pred_region
      %52 = dma.done [#allocation10], 2048
    $region21: #{tpu_custom_call.1} parent=1 // pred_fallthru
      _
    %s53 = sld [smem:[#allocation3]]
    %s54 = smul.u32 2, %s53
    %s55 = sld [smem:[#allocation5]]
    %p56 = scmp.eq.s32.totalorder %s55, 1
    // Predicated region
    $region22: #{tpu_custom_call.1} parent=1 // pred_check
      %p57 = pneg %p56
    $region23: #{tpu_custom_call.1} parent=1 // pred_check_branch
      %59 = sbr.rel (%p57) target = $region25
    $region24: #{tpu_custom_call.1} parent=1 // pred_region
      %v60 = vld [vmem:[%s5] sm:$0x1]
      %v62 = vperm.slane %v60, 0
      %64 = vst [vmem:[#allocation11] sm:$0xff] %v62
      %65 = vst [vmem:[#allocation11 + $0x8] sm:$0xff] %v62
    $region25: #{tpu_custom_call.1} parent=1 // pred_fallthru
      _
    %s66 = sld [smem:[#allocation4]]
    %s67 = smul.u32 %s66, 128
    %s68 = scalar_lea.vmem [#allocation9], %s67
    %v69 = vld [vmem:[%s68] sm:$0xff]
    %v70 = vld [vmem:[%s68 + $0x8] sm:$0xff]
    %v71 = vld [vmem:[%s68 + $0x10] sm:$0xff]
    %v72 = vld [vmem:[%s68 + $0x18] sm:$0xff]
    %v73 = vld [vmem:[%s68 + $0x20] sm:$0xff]
    %v74 = vld [vmem:[%s68 + $0x28] sm:$0xff]
    %v75 = vld [vmem:[%s68 + $0x30] sm:$0xff]
    %v76 = vld [vmem:[%s68 + $0x38] sm:$0xff]
    %v77 = vld [vmem:[%s68 + $0x40] sm:$0xff]
    %v78 = vld [vmem:[%s68 + $0x48] sm:$0xff]
    %v79 = vld [vmem:[%s68 + $0x50] sm:$0xff]
    %v80 = vld [vmem:[%s68 + $0x58] sm:$0xff]
    %v81 = vld [vmem:[%s68 + $0x60] sm:$0xff]
    %v82 = vld [vmem:[%s68 + $0x68] sm:$0xff]
    %v83 = vld [vmem:[%s68 + $0x70] sm:$0xff]
    %v84 = vld [vmem:[%s68 + $0x78] sm:$0xff]
    %v85 = vld [vmem:[#allocation11] sm:$0xff]
    %v86 = vld [vmem:[#allocation11 + $0x8] sm:$0xff]
    %v87 = vld [vmem:[#allocation6] sm:$0xff]
    %v88 = vld [vmem:[#allocation6 + $0x8] sm:$0xff]
    %89 = vmatpush.msra.mxu0 %v84
    %90 = vmatpush.msra.mxu0 %v83
    %91 = vmatpush.msra.mxu0 %v82
    %92 = vmatpush.msra.mxu0 %v81
    %93 = vmatpush.msra.mxu0 %v80
    %94 = vmatpush.msra.mxu0 %v79
    %95 = vmatpush.msra.mxu0 %v78
    %96 = vmatpush.msra.mxu0 %v77
    %97 = vmatpush.msra.mxu0 %v76
    %98 = vmatpush.msra.mxu0 %v75
    %99 = vmatpush.msra.mxu0 %v74
    %100 = vmatpush.msra.mxu0 %v73
    %101 = vmatpush.msra.mxu0 %v72
    %102 = vmatpush.msra.mxu0 %v71
    %103 = vmatpush.msra.mxu0 %v70
    %104 = vmatpush.msra.mxu0 %v69
    %105 = vmatmul.f32.gmra.mxu0 %v87
    %v106 = vpop.f32.mrf.mxu0
    %v107 = vadd.f32 0.0, %v106
    %108 = vmatmul.f32.gmra.mxu0 %v88
    %v109 = vpop.f32.mrf.mxu0
    %v110 = vadd.f32 0.0, %v109
    %111 = vdwg.mxu0
    %v112 = vadd.f32 %v85, %v107
    %v113 = vadd.f32 %v86, %v110
    %114 = vst [vmem:[#allocation11] sm:$0xff] %v112
    %115 = vst [vmem:[#allocation11 + $0x8] sm:$0xff] %v113
    // Predicated region
    $region26: #{tpu_custom_call.1} parent=1 // pred_check
      _
    $region27: #{tpu_custom_call.1} parent=1 // pred_check_branch
      %117 = sbr.rel (0) target = $region29
    $region28: #{tpu_custom_call.1} parent=1 // pred_region
      %s118 = sld [smem:[#allocation3]]
      %s119 = smul.u32 2, %s118
      %121 = vsyncadd [#allocation8], 0
      %s122 = smul.addr %s119, 8
      %s123 = scalar_lea.hbm %s6, %s122
      %s124 = sshll.u32 [#allocation11], 4
      %s125 = int_to_ptr.vmem [resolvable:$true] %s124
      %s126 = sshll.u32 %s123, 4
      %s127 = int_to_ptr.hbm [resolvable:$true] %s126
      %132 = dma.vmem_to_hbm [thread:$0]  %s125, 256, %s127, [#allocation8], 128, 128, 8
    $region29: #{tpu_custom_call.1} parent=1 // pred_fallthru
      _
    // Predicated region
    $region30: #{tpu_custom_call.1} parent=1 // pred_check
      _
    $region31: #{tpu_custom_call.1} parent=1 // pred_check_branch
      %134 = sbr.rel (0) target = $region33
    $region32: #{tpu_custom_call.1} parent=1 // pred_region
      %136 = dma.done [#allocation8], 256
    $region33: #{tpu_custom_call.1} parent=1 // pred_fallthru
      _
    %137 = vsyncpa [#allocation7], 1
    %138 = vsyncpa [#allocation10], 1
    %139 = vsyncpa [#allocation8], 1

</llo_original>
